<compile_context>
chip_gen: v6e
topology: v6e:2x2x1
jax: 0.10.0
libtpu: 0.0.40
codegen_flags: <defaults>
</compile_context>

<pallas_src>
from functools import partial

import jax
import jax.numpy as jnp
from jax.experimental import pallas as pl
from jax.experimental.pallas import tpu as pltpu


# --------------------------------------------------------------------------
# Small helpers
# --------------------------------------------------------------------------
def _cdiv(a, b):
    return (a + b - 1) // b


def _round_up(x, m):
    return _cdiv(x, m) * m


def _vmem_limit_bytes():
    """Per-chip scoped-VMEM budget (75% of physical), with a safe fallback."""
    try:
        cap = int(pltpu.get_tpu_info().vmem_capacity_bytes)
        return (cap * 3) // 4
    except Exception:
        return 48 << 20  # fits v7x's 64 MiB physical VMEM with headroom


_FAST_PATH_MAX_BYTES = 4 << 20  # gridless single-block path only for tiny work
_TM_MAX = 512
_TN_MAX = 512
_TK_SPLIT = 2048  # reduction tile when the full-K stripe does not fit VMEM


# --------------------------------------------------------------------------
# Kernels
# --------------------------------------------------------------------------
def _matmul_nok_kernel(y_ref, w_ref, o_ref):
    """One output tile, full reduction dim resident in VMEM (no k axis)."""
    o_ref[...] = jnp.dot(
        y_ref[...], w_ref[...], preferred_element_type=jnp.float32
    ).astype(o_ref.dtype)


def _matmul_k_kernel(y_ref, w_ref, o_ref, acc_ref):
    """One (tm, tn) output tile, accumulating over the reduction axis."""
    k = pl.program_id(2)

    @pl.when(k == 0)
    def _():
        acc_ref[...] = jnp.zeros_like(acc_ref)

    acc_ref[...] += jnp.dot(
        y_ref[...], w_ref[...], preferred_element_type=jnp.float32
    )

    @pl.when(k == pl.num_programs(2) - 1)
    def _():
        o_ref[...] = acc_ref[...].astype(o_ref.dtype)


# --------------------------------------------------------------------------
# Wrapper
# --------------------------------------------------------------------------
@partial(jax.jit, static_argnames=("n_out", "tk", "tn", "vmem_limit"))
def _pinv_apply_2d(y, w, *, n_out, tk, tn, vmem_limit):
    """x_hat = (y @ w)[:, :n_out].

    y: (B, M) float32
    w: (Kp, Np) pre-padded (zeros), pre-cast weight = pinv(H).T, Kp >= M.
    """
    B, M = y.shape
    Kp, Np = w.shape
    out_dtype = jnp.float32

    # Native-MXU path: stream activations in the same dtype as the weight.
    if y.dtype != w.dtype:
        y = y.astype(w.dtype)

    sub = 16 if w.dtype == jnp.bfloat16 else 8
    ibytes = w.dtype.itemsize
    total_bytes = B * M * ibytes + Kp * Np * ibytes + B * Np * 4
    cost = pl.CostEstimate(
        flops=2 * B * Kp * Np, transcendentals=0, bytes_accessed=total_bytes
    )

    # ---- tiny-shape fast path: single block, no grid, no pipeline ----------
    if total_bytes <= _FAST_PATH_MAX_BYTES:
        Bp = _round_up(max(B, sub), sub)
        yp = y if (Bp == B and Kp == M) else jnp.pad(y, ((0, Bp - B), (0, Kp - M)))
        out = pl.pallas_call(
            _matmul_nok_kernel,
            out_shape=jax.ShapeDtypeStruct((Bp, Np), out_dtype),
            in_specs=[
                pl.BlockSpec((Bp, Kp), lambda: (0, 0)),
                pl.BlockSpec((Kp, Np), lambda: (0, 0)),
            ],
            out_specs=pl.BlockSpec((Bp, Np), lambda: (0, 0)),
            compiler_params=pltpu.CompilerParams(vmem_limit_bytes=vmem_limit),
            cost_estimate=cost,
        )(yp, w)
        if Bp != B or Np != n_out:
            out = out[:B, :n_out]
        return out

    # ---- tiled path ---------------------------------------------------------
    # tm chosen to minimize batch-padding waste (review item).
    n_row_tiles = max(1, _cdiv(B, _TM_MAX))
    tm = _round_up(_cdiv(B, n_row_tiles), sub)
    Bp = _round_up(B, tm)
    yp = y if (Bp == B and Kp == M) else jnp.pad(y, ((0, Bp - B), (0, Kp - M)))

    # Keep >=2 tiles along a parallel axis so v7x's second TensorCore is used.
    tn_eff = tn
    if (Bp // tm) == 1 and (Np // tn_eff) == 1 and Np % 256 == 0:
        tn_eff = Np // 2

    if tk == Kp:
        # Whole reduction stripe resident in VMEM; weight-stationary order:
        # batch axis innermost -> the (Kp, tn) weight tile is DMA'd once per
        # N-tile instead of once per (B-tile, N-tile) pair.
        out = pl.pallas_call(
            _matmul_nok_kernel,
            out_shape=jax.ShapeDtypeStruct((Bp, Np), out_dtype),
            grid_spec=pltpu.PrefetchScalarGridSpec(
                num_scalar_prefetch=0,
                grid=(Np // tn_eff, Bp // tm),
                in_specs=[
                    pl.BlockSpec((tm, Kp), lambda j, i: (i, 0)),
                    pl.BlockSpec((Kp, tn_eff), lambda j, i: (0, j)),
                ],
                out_specs=pl.BlockSpec((tm, tn_eff), lambda j, i: (i, j)),
            ),
            compiler_params=pltpu.CompilerParams(
                dimension_semantics=("parallel", "parallel"),
                vmem_limit_bytes=vmem_limit,
            ),
            cost_estimate=cost,
        )(yp, w)
    else:
        # Split-K fallback for very large M (rare for this module).
        out = pl.pallas_call(
            _matmul_k_kernel,
            out_shape=jax.ShapeDtypeStruct((Bp, Np), out_dtype),
            grid_spec=pltpu.PrefetchScalarGridSpec(
                num_scalar_prefetch=0,
                grid=(Bp // tm, Np // tn_eff, Kp // tk),
                in_specs=[
                    pl.BlockSpec((tm, tk), lambda i, j, k: (i, k)),
                    pl.BlockSpec((tk, tn_eff), lambda i, j, k: (k, j)),
                ],
                out_specs=pl.BlockSpec((tm, tn_eff), lambda i, j, k: (i, j)),
                scratch_shapes=[pltpu.VMEM((tm, tn_eff), jnp.float32)],
            ),
            compiler_params=pltpu.CompilerParams(
                dimension_semantics=("parallel", "parallel", "arbitrary"),
                vmem_limit_bytes=vmem_limit,
            ),
            cost_estimate=cost,
        )(yp, w)

    if Bp != B or Np != n_out:
        out = out[:B, :n_out]
    return out


# --------------------------------------------------------------------------
# Module mirrors
# --------------------------------------------------------------------------
class PseudoInversePallas:
    """Mirror of spyrit PseudoInverse: forward(y, meas_op) = meas_op.pinv(y)."""

    def __call__(self, y, meas_op):
        return meas_op.pinv(y)


class LinearMeasOp:
    """Minimal measurement operator: H (M, N); pinv(y) = y @ pinv(H).T.

    All weight preparation (pinv, transpose, tile-aligned zero padding,
    optional bf16 cast) happens once here — never in the per-call hot path.
    """

    def __init__(self, H, weight_dtype=jnp.float32):
        H = jnp.asarray(H, jnp.float32)
        self.H = H                                   # (M, N)
        self.M, self.N = H.shape
        self.H_pinv = jnp.linalg.pinv(H)             # (N, M), setup-time glue
        hpt = self.H_pinv.T                          # (M, N)

        # --- setup-time tiling decisions -----------------------------------
        self._vmem_limit = _vmem_limit_bytes()
        self._tn = min(_TN_MAX, _round_up(self.N, 128))
        Np = _round_up(self.N, self._tn)

        w_bytes = jnp.dtype(weight_dtype).itemsize
        Kp_full = _round_up(self.M, 128)
        # Double-buffered working set of the full-K (no-k-axis) path.
        full_k_work = 2 * (
            _TM_MAX * Kp_full * w_bytes
            + Kp_full * self._tn * w_bytes
            + _TM_MAX * self._tn * 4
        )
        if full_k_work <= self._vmem_limit:
            self._tk = Kp_full
            Kp = Kp_full
        else:
            self._tk = _TK_SPLIT
            Kp = _round_up(self.M, self._tk)

        # Pre-padded (zeros: exact for a matmul reduction), pre-cast weight.
        hpt_p = jnp.pad(hpt, ((0, Kp - self.M), (0, Np - self.N)))
        self.H_pinv_T = hpt_p.astype(weight_dtype)   # (Kp, Np)

    def pinv(self, y):
        *lead, M = y.shape
        assert M == self.M, "measurement dim mismatch"
        y2 = jnp.asarray(y, jnp.float32).reshape((-1, M))
        out = _pinv_apply_2d(
            y2,
            self.H_pinv_T,
            n_out=self.N,
            tk=self._tk,
            tn=self._tn,
            vmem_limit=self._vmem_limit,
        )
        return out.reshape((*lead, self.N))


def pseudo_inverse_apply(y, meas_op):
    """x_hat of shape (*, N) for measurements y of shape (*, M)."""
    return meas_op.pinv(y)


# --------------------------------------------------------------------------
# Self-test
# --------------------------------------------------------------------------
if __name__ == "__main__":
    key = jax.random.PRNGKey(0)
    k_h, k_y, k_h2, k_y2 = jax.random.split(key, 4)

    pinv_op = PseudoInversePallas()

    # --- 1) Small shapes (gridless fast path), f32 weight -------------------
    B, M, N = 8, 128, 256  # 16x16 image -> N = 256
    H = jax.random.normal(k_h, (M, N), dtype=jnp.float32)
    y = jax.random.normal(k_y, (B, M), dtype=jnp.float32)

    meas_op = LinearMeasOp(H)                 # f32 weight (tight tolerance)
    x_hat = jax.block_until_ready(pinv_op(y, meas_op))
    x_ref = y @ meas_op.H_pinv.T
    assert x_hat.shape == (B, N)
    assert jnp.allclose(x_hat, x_ref, atol=1e-4, rtol=1e-4)

    # bf16 weight streaming (halved HBM traffic); f32 accumulation inside.
    meas_op_bf16 = LinearMeasOp(H, weight_dtype=jnp.bfloat16)
    x_bf16 = jax.block_until_ready(pinv_op(y, meas_op_bf16))
    assert x_bf16.shape == (B, N)
    assert jnp.allclose(x_bf16, x_ref, atol=1e-2, rtol=1e-1)

    # --- 2) Medium shapes exercising the tiled weight-stationary path -------
    B2, M2, N2 = 32, 512, 2048
    H2 = jax.random.normal(k_h2, (M2, N2), dtype=jnp.float32)
    y2 = jax.random.normal(k_y2, (B2, M2), dtype=jnp.float32)

    meas_op2 = LinearMeasOp(H2)
    x2 = jax.block_until_ready(pinv_op(y2, meas_op2))
    x2_ref = y2 @ meas_op2.H_pinv.T
    assert x2.shape == (B2, N2)
    assert jnp.allclose(x2, x2_ref, atol=1e-4, rtol=1e-3)

    print("KERNEL_OK")
</pallas_src>

<mosaic_0001>
module attributes {stable_mosaic.version = 11 : i64} {
  func.func @_matmul_nok_kernel(%arg0: memref<8x128xf32, #tpu.memory_space<vmem>>, %arg1: memref<128x256xf32, #tpu.memory_space<vmem>>, %arg2: memref<8x256xf32, #tpu.memory_space<vmem>>) attributes {dimension_semantics = [], scalar_prefetch = 0 : i64, scratch_operands = 0 : i64, tpu.core_type = #tpu.core_type<tc>} {
    %c0 = arith.constant 0 : index
    %c0_0 = arith.constant 0 : index
    %0 = vector.load %arg0[%c0, %c0_0] : memref<8x128xf32, #tpu.memory_space<vmem>>, vector<8x128xf32>
    %c0_1 = arith.constant 0 : index
    %c0_2 = arith.constant 0 : index
    %1 = vector.load %arg1[%c0_1, %c0_2] : memref<128x256xf32, #tpu.memory_space<vmem>>, vector<128x256xf32>
    %cst = arith.constant dense<0.000000e+00> : vector<8x256xf32>
    %2 = tpu.matmul %0, %1, %cst {dimension_numbers = #tpu.dot_dimension_numbers<[1], [0], [0], [1], [0, 0, 1, 1], [], []>} : vector<8x128xf32>, vector<128x256xf32>, vector<8x256xf32> -> vector<8x256xf32>
    %c0_3 = arith.constant 0 : index
    %c0_4 = arith.constant 0 : index
    %3 = vector.load %arg2[%c0_3, %c0_4] : memref<8x256xf32, #tpu.memory_space<vmem>>, vector<8x256xf32>
    tpu.vector_store %arg2[%c0_3, %c0_4], %2 {strides = array<i32>} : memref<8x256xf32, #tpu.memory_space<vmem>>, vector<8x256xf32>,
    return
  }
}

</mosaic_0001>

<llo_original>
// kernel: _pinv_apply_2d.1
$region0: #{_pinv_apply_2d.1}
  #allocation0 [shape = 'u32[]', space=smem, size = 0x4, offset = 0x4, fixed_abs, tag = 'smem constant byte address 0x4 - core index']
  #allocation1 [shape = 'u32[144,128]{1,0:T(1,128)}', space=vmem, size = 0x12000, scoped, tag = 'internal scratch']
  %s0 = inlined_call_operand.hbm [shape: f32[8,128], index: 0, kind: input, shape index: {}]
  %s1 = inlined_call_operand.hbm [shape: f32[128,256], index: 1, kind: input, shape index: {}]
  %s2 = inlined_call_operand.hbm [shape: f32[8,256], index: 2, kind: output, shape index: {}]
  %s3 = sld [smem:[#allocation0]]
  $region26: #{_pinv_apply_2d.1} parent=0
    _
  %s5 = ssub.s32 1, %s3
  %s6 = scalar_select 0, %s5, %s3
  $region1: #{_pinv_apply_2d.1} parent=0
    #allocation2 [shape = 'u8[4096]{0}', space=vmem, size = 0x1000, scoped, tag = 'input window, operand 0, single buffered']
    #allocation3 [shape = 's32[1]{0}', space=sflag, size = 0x4, scoped, tag = 'scoped memory for _pinv_apply_2d.1']
    #allocation4 [shape = 's32[1]{0}', space=sflag, size = 0x4, scoped, tag = 'scoped memory for _pinv_apply_2d.1']
    #allocation5 [shape = 'u8[131072]{0}', space=vmem, size = 0x20000, scoped, tag = 'input window, operand 1, single buffered']
    #allocation6 [shape = 's32[1]{0}', space=sflag, size = 0x4, scoped, tag = 'scoped memory for _pinv_apply_2d.1']
    #allocation7 [shape = 'u8[8192]{0}', space=vmem, size = 0x2000, scoped, tag = 'output window, operand 0, single buffered']
    %7 = vsyncpa [#allocation3], 0
    %8 = vsyncpa [#allocation6], 0
    %9 = vsyncpa [#allocation4], 0
    // Predicated region
    $region2: #{_pinv_apply_2d.1} parent=1 // pred_check
      _
    $region3: #{_pinv_apply_2d.1} parent=1 // pred_check_branch
      %11 = sbr.rel (0) target = $region5
    $region4: #{_pinv_apply_2d.1} parent=1 // pred_region
      %s13 = ssub.s32 128, 128
      %14 = vsyncadd [#allocation3], %s13
      %s16 = sshll.u32 [#allocation2], 4
      %s17 = int_to_ptr.vmem [resolvable:$true] %s16
      %19 = dma.hbm_to_vmem [thread:$0]  %s0, 128, %s17, [#allocation3]
    $region5: #{_pinv_apply_2d.1} parent=1 // pred_fallthru
      _
    // Predicated region
    $region6: #{_pinv_apply_2d.1} parent=1 // pred_check
      _
    $region7: #{_pinv_apply_2d.1} parent=1 // pred_check_branch
      %21 = sbr.rel (0) target = $region9
    $region8: #{_pinv_apply_2d.1} parent=1 // pred_region
      %s23 = ssub.s32 4096, 4096
      %24 = vsyncadd [#allocation6], %s23
      %s25 = sshll.u32 [#allocation5], 4
      %s26 = int_to_ptr.vmem [resolvable:$true] %s25
      %31 = dma.hbm_to_vmem [thread:$0]  %s1, 4096, %s26, [#allocation6], 256, 256, 16
    $region9: #{_pinv_apply_2d.1} parent=1 // pred_fallthru
      _
    // Predicated region
    $region10: #{_pinv_apply_2d.1} parent=1 // pred_check
      _
    $region11: #{_pinv_apply_2d.1} parent=1 // pred_check_branch
      %33 = sbr.rel (0) target = $region13
    $region12: #{_pinv_apply_2d.1} parent=1 // pred_region
      %34 = dma.done [#allocation3], 128
    $region13: #{_pinv_apply_2d.1} parent=1 // pred_fallthru
      _
    // Predicated region
    $region14: #{_pinv_apply_2d.1} parent=1 // pred_check
      _
    $region15: #{_pinv_apply_2d.1} parent=1 // pred_check_branch
      %36 = sbr.rel (0) target = $region17
    $region16: #{_pinv_apply_2d.1} parent=1 // pred_region
      %37 = dma.done [#allocation6], 4096
    $region17: #{_pinv_apply_2d.1} parent=1 // pred_fallthru
      _
    %v38 = vld [vmem:[#allocation2] sm:$0xff]
    %v39 = vld [vmem:[#allocation5] sm:$0xff]
    %v40 = vld [vmem:[#allocation5 + $0x8] sm:$0xff]
    %v41 = vld [vmem:[#allocation5 + $0x10] sm:$0xff]
    %v42 = vld [vmem:[#allocation5 + $0x18] sm:$0xff]
    %v43 = vld [vmem:[#allocation5 + $0x20] sm:$0xff]
    %v44 = vld [vmem:[#allocation5 + $0x28] sm:$0xff]
    %v45 = vld [vmem:[#allocation5 + $0x30] sm:$0xff]
    %v46 = vld [vmem:[#allocation5 + $0x38] sm:$0xff]
    %v47 = vld [vmem:[#allocation5 + $0x40] sm:$0xff]
    %v48 = vld [vmem:[#allocation5 + $0x48] sm:$0xff]
    %v49 = vld [vmem:[#allocation5 + $0x50] sm:$0xff]
    %v50 = vld [vmem:[#allocation5 + $0x58] sm:$0xff]
    %v51 = vld [vmem:[#allocation5 + $0x60] sm:$0xff]
    %v52 = vld [vmem:[#allocation5 + $0x68] sm:$0xff]
    %v53 = vld [vmem:[#allocation5 + $0x70] sm:$0xff]
    %v54 = vld [vmem:[#allocation5 + $0x78] sm:$0xff]
    %v55 = vld [vmem:[#allocation5 + $0x80] sm:$0xff]
    %v56 = vld [vmem:[#allocation5 + $0x88] sm:$0xff]
    %v57 = vld [vmem:[#allocation5 + $0x90] sm:$0xff]
    %v58 = vld [vmem:[#allocation5 + $0x98] sm:$0xff]
    %v59 = vld [vmem:[#allocation5 + $0xa0] sm:$0xff]
    %v60 = vld [vmem:[#allocation5 + $0xa8] sm:$0xff]
    %v61 = vld [vmem:[#allocation5 + $0xb0] sm:$0xff]
    %v62 = vld [vmem:[#allocation5 + $0xb8] sm:$0xff]
    %v63 = vld [vmem:[#allocation5 + $0xc0] sm:$0xff]
    %v64 = vld [vmem:[#allocation5 + $0xc8] sm:$0xff]
    %v65 = vld [vmem:[#allocation5 + $0xd0] sm:$0xff]
    %v66 = vld [vmem:[#allocation5 + $0xd8] sm:$0xff]
    %v67 = vld [vmem:[#allocation5 + $0xe0] sm:$0xff]
    %v68 = vld [vmem:[#allocation5 + $0xe8] sm:$0xff]
    %v69 = vld [vmem:[#allocation5 + $0xf0] sm:$0xff]
    %v70 = vld [vmem:[#allocation5 + $0xf8] sm:$0xff]
    %71 = vmatprep.subr.mxu0 %v70
    %72 = vmatpush1.msra.mxu0 %v69
    %73 = vmatprep.subr.mxu0 %v68
    %74 = vmatpush1.msra.mxu0 %v67
    %75 = vmatprep.subr.mxu0 %v66
    %76 = vmatpush1.msra.mxu0 %v65
    %77 = vmatprep.subr.mxu0 %v64
    %78 = vmatpush1.msra.mxu0 %v63
    %79 = vmatprep.subr.mxu0 %v62
    %80 = vmatpush1.msra.mxu0 %v61
    %81 = vmatprep.subr.mxu0 %v60
    %82 = vmatpush1.msra.mxu0 %v59
    %83 = vmatprep.subr.mxu0 %v58
    %84 = vmatpush1.msra.mxu0 %v57
    %85 = vmatprep.subr.mxu0 %v56
    %86 = vmatpush1.msra.mxu0 %v55
    %87 = vmatprep.subr.mxu0 %v54
    %88 = vmatpush1.msra.mxu0 %v53
    %89 = vmatprep.subr.mxu0 %v52
    %90 = vmatpush1.msra.mxu0 %v51
    %91 = vmatprep.subr.mxu0 %v50
    %92 = vmatpush1.msra.mxu0 %v49
    %93 = vmatprep.subr.mxu0 %v48
    %94 = vmatpush1.msra.mxu0 %v47
    %95 = vmatprep.subr.mxu0 %v46
    %96 = vmatpush1.msra.mxu0 %v45
    %97 = vmatprep.subr.mxu0 %v44
    %98 = vmatpush1.msra.mxu0 %v43
    %99 = vmatprep.subr.mxu0 %v42
    %100 = vmatpush1.msra.mxu0 %v41
    %101 = vmatprep.subr.mxu0 %v40
    %102 = vmatpush1.msra.mxu0 %v39
    %103 = vmatprep.subr.mxu0 0.0
    %104 = vmatpush2.msra.mxu0 0.0
    %105 = vmatprep.subr.mxu0 0.0
    %106 = vmatpush2.msra.mxu0 0.0
    %107 = vmatprep.subr.mxu0 0.0
    %108 = vmatpush2.msra.mxu0 0.0
    %109 = vmatprep.subr.mxu0 0.0
    %110 = vmatpush2.msra.mxu0 0.0
    %111 = vmatprep.subr.mxu0 0.0
    %112 = vmatpush2.msra.mxu0 0.0
    %113 = vmatprep.subr.mxu0 0.0
    %114 = vmatpush2.msra.mxu0 0.0
    %115 = vmatprep.subr.mxu0 0.0
    %116 = vmatpush2.msra.mxu0 0.0
    %117 = vmatprep.subr.mxu0 0.0
    %118 = vmatpush2.msra.mxu0 0.0
    %119 = vmatprep.subr.mxu0 0.0
    %120 = vmatpush2.msra.mxu0 0.0
    %121 = vmatprep.subr.mxu0 0.0
    %122 = vmatpush2.msra.mxu0 0.0
    %123 = vmatprep.subr.mxu0 0.0
    %124 = vmatpush2.msra.mxu0 0.0
    %125 = vmatprep.subr.mxu0 0.0
    %126 = vmatpush2.msra.mxu0 0.0
    %127 = vmatprep.subr.mxu0 0.0
    %128 = vmatpush2.msra.mxu0 0.0
    %129 = vmatprep.subr.mxu0 0.0
    %130 = vmatpush2.msra.mxu0 0.0
    %131 = vmatprep.subr.mxu0 0.0
    %132 = vmatpush2.msra.mxu0 0.0
    %133 = vmatprep.subr.mxu0 0.0
    %134 = vmatpush2.msra.mxu0 0.0
    %135 = vmatprep.mubr.f32.mxu0 0.0
    %136 = vmatmul.mubr.f32.gmra.mxu0 %v38
    %v137 = vpop.f32.mrf.mxu0
    %v138 = vadd.f32 0.0, %v137
    %v139 = vpop.f32.mrf.mxu0
    %v140 = vadd.f32 0.0, %v139
    %141 = vdwg.mxu0
    %142 = vst [vmem:[#allocation7] sm:$0xff] %v138
    %143 = vst [vmem:[#allocation7 + $0x8] sm:$0xff] %v140
    // Predicated region
    $region18: #{_pinv_apply_2d.1} parent=1 // pred_check
      _
    $region19: #{_pinv_apply_2d.1} parent=1 // pred_check_branch
      %145 = sbr.rel (0) target = $region21
    $region20: #{_pinv_apply_2d.1} parent=1 // pred_region
      %s147 = ssub.s32 256, 256
      %148 = vsyncadd [#allocation4], %s147
      %s150 = sshll.u32 [#allocation7], 4
      %s151 = int_to_ptr.vmem [resolvable:$true] %s150
      %153 = dma.vmem_to_hbm [thread:$0]  %s151, 256, %s2, [#allocation4]
    $region21: #{_pinv_apply_2d.1} parent=1 // pred_fallthru
      _
    // Predicated region
    $region22: #{_pinv_apply_2d.1} parent=1 // pred_check
      _
    $region23: #{_pinv_apply_2d.1} parent=1 // pred_check_branch
      %155 = sbr.rel (0) target = $region25
    $region24: #{_pinv_apply_2d.1} parent=1 // pred_region
      %156 = dma.done [#allocation4], 256
    $region25: #{_pinv_apply_2d.1} parent=1 // pred_fallthru
      _
    %157 = vsyncpa [#allocation3], 1
    %158 = vsyncpa [#allocation6], 1
    %159 = vsyncpa [#allocation4], 1

</llo_original>
